<compile_context>
chip_gen: v7x
topology: tpu7x:2x2x1
jax: 0.10.0
libtpu: 0.0.40
codegen_flags: <defaults>
</compile_context>

<pallas_src>
import jax
import jax.numpy as jnp
from jax.experimental import pallas as pl
from jax.experimental.pallas import tpu as pltpu

IN_CHANNELS = 384 + 384 + 128 + 128   # 1024
NUM_CLASSES = 8
_TM_MAX = 512                         # positions per output tile (multiple of 128)


def _logits_kernel(x_ref, w_ref, b_ref, o_ref):
    # x_ref: (1, C, TM)  w_ref: (K, C)  b_ref: (K, 1)  o_ref: (1, K, TM)
    acc = jnp.dot(w_ref[...], x_ref[0], preferred_element_type=jnp.float32)
    o_ref[0] = (acc + b_ref[...]).astype(o_ref.dtype)


def _conv1x1x1_ref(x, weight, bias):
    # Pure-JAX reference for the 1x1x1 conv (channel einsum), NCDHW layout.
    return (jnp.einsum("ncthw,kc->nkthw", x, weight)
            + bias[None, :, None, None, None])


def task_classifier_forward(x, weight, bias, *, spatial_squeeze=True,
                            min_pallas_positions=0):
    """Forward pass of task_classifier.

    x:      (N, C, T, H, W) float32
    weight: (K, C)     (Conv3d weight (K, C, 1, 1, 1) with kernel dims dropped)
    bias:   (K,)
    Returns logits with torch's squeeze(3).squeeze(3) semantics applied when
    spatial_squeeze is True (size-1 dims only are removed).
    """
    n, c, t, h, w = x.shape
    k = weight.shape[0]
    assert c == weight.shape[1], (c, weight.shape)
    m = t * h * w

    if n * m < min_pallas_positions:
        # Degenerate tiny shapes: kernel-launch overhead dominates; let XLA do it.
        out5 = _conv1x1x1_ref(x, weight, bias)
    else:
        # (N, C, T, H, W) -> (N, C, M): free, trailing dims are contiguous.
        x3 = x.reshape(n, c, m)
        b2 = bias.reshape(k, 1)

        tm = m if m <= _TM_MAX else _TM_MAX      # tile the position axis
        grid = (n, pl.cdiv(m, tm))               # tail tile handled by masking

        out3 = pl.pallas_call(
            _logits_kernel,
            out_shape=jax.ShapeDtypeStruct((n, k, m), x.dtype),
            grid=grid,
            in_specs=[
                pl.BlockSpec((1, c, tm), lambda i, j: (i, 0, j)),  # x tile
                pl.BlockSpec((k, c), lambda i, j: (0, 0)),         # weight (resident)
                pl.BlockSpec((k, 1), lambda i, j: (0, 0)),         # bias   (resident)
            ],
            out_specs=pl.BlockSpec((1, k, tm), lambda i, j: (i, 0, j)),
            compiler_params=pltpu.CompilerParams(
                dimension_semantics=("parallel", "parallel")),
        )(x3, weight, b2)

        out5 = out3.reshape(n, k, t, h, w)       # free reshape back to NKTHW

    if spatial_squeeze:
        # Mirror torch's logits.squeeze(3).squeeze(3): only drop size-1 dims.
        if out5.shape[3] == 1:
            out5 = jnp.squeeze(out5, axis=3)
        if out5.shape[3] == 1:
            out5 = jnp.squeeze(out5, axis=3)
    return out5


def _reference(x, weight, bias, *, spatial_squeeze=True):
    out = _conv1x1x1_ref(x, weight, bias)
    if spatial_squeeze:
        if out.shape[3] == 1:
            out = jnp.squeeze(out, axis=3)
        if out.shape[3] == 1:
            out = jnp.squeeze(out, axis=3)
    return out


if __name__ == "__main__":
    key = jax.random.PRNGKey(0)
    kx, kw, kb, kx2 = jax.random.split(key, 4)

    # Shapes consistent with the module: C fixed at 1024, K = 8, H = W = 1.
    N, C, T, H, W = 2, IN_CHANNELS, 2, 1, 1
    x = jax.random.normal(kx, (N, C, T, H, W), dtype=jnp.float32)

    # Conv3d weight (K, C, 1, 1, 1) -> (K, C); small deterministic init.
    weight = jax.random.normal(kw, (NUM_CLASSES, C), dtype=jnp.float32) * 0.02
    bias = jax.random.normal(kb, (NUM_CLASSES,), dtype=jnp.float32) * 0.02

    out = jax.block_until_ready(task_classifier_forward(x, weight, bias))
    ref = _reference(x, weight, bias)
    assert out.shape == (N, NUM_CLASSES, T), out.shape
    assert jnp.allclose(out, ref, atol=1e-3, rtol=1e-3), "mismatch vs reference (small)"

    # Second check: larger T exercises the M-tiling path (grid over M with a
    # partial tail tile: M = 600 -> tiles of 512 + 88) while staying small.
    x2 = jax.random.normal(kx2, (1, C, 600, 1, 1), dtype=jnp.float32)
    out2 = jax.block_until_ready(task_classifier_forward(x2, weight, bias))
    ref2 = _reference(x2, weight, bias)
    assert out2.shape == (1, NUM_CLASSES, 600), out2.shape
    assert jnp.allclose(out2, ref2, atol=1e-3, rtol=1e-3), "mismatch vs reference (tiled)"

    print("KERNEL_OK")
</pallas_src>

<mosaic_0001>
module attributes {stable_mosaic.version = 11 : i64} {
  func.func @_logits_kernel(%arg0: i32, %arg1: i32, %arg2: memref<1x1024x2xf32, #tpu.memory_space<vmem>>, %arg3: memref<8x1024xf32, #tpu.memory_space<vmem>>, %arg4: memref<8x1xf32, #tpu.memory_space<vmem>>, %arg5: memref<1x8x2xf32, #tpu.memory_space<vmem>>) attributes {dimension_semantics = [#tpu.dimension_semantics<parallel>, #tpu.dimension_semantics<parallel>], iteration_bounds = array<i64: 2, 1>, scalar_prefetch = 0 : i64, scratch_operands = 0 : i64, tpu.core_type = #tpu.core_type<tc>, window_params = [{transform_indices = @transform_0, window_bounds = array<i64: 1, 1024, 2>}, {pipeline_mode = #tpu.pipeline_mode<synchronous>, transform_indices = @transform_1, window_bounds = array<i64: 8, 1024>}, {pipeline_mode = #tpu.pipeline_mode<synchronous>, transform_indices = @transform_2, window_bounds = array<i64: 8, 1>}, {transform_indices = @transform_3, window_bounds = array<i64: 1, 8, 2>}]} {
    %c0 = arith.constant 0 : index
    %c0_0 = arith.constant 0 : index
    %0 = vector.load %arg3[%c0, %c0_0] : memref<8x1024xf32, #tpu.memory_space<vmem>>, vector<8x1024xf32>
    %c0_1 = arith.constant 0 : index
    %c0_2 = arith.constant 0 : index
    %c0_3 = arith.constant 0 : index
    %1 = vector.load %arg2[%c0_1, %c0_2, %c0_3] : memref<1x1024x2xf32, #tpu.memory_space<vmem>>, vector<1x1024x2xf32>
    %2 = vector.shape_cast %1 : vector<1x1024x2xf32> to vector<1024x2xf32>
    %cst = arith.constant dense<0.000000e+00> : vector<8x2xf32>
    %3 = tpu.matmul %0, %2, %cst {dimension_numbers = #tpu.dot_dimension_numbers<[1], [0], [0], [1], [0, 0, 1, 1], [], []>} : vector<8x1024xf32>, vector<1024x2xf32>, vector<8x2xf32> -> vector<8x2xf32>
    %c0_4 = arith.constant 0 : index
    %c0_5 = arith.constant 0 : index
    %4 = vector.load %arg4[%c0_4, %c0_5] : memref<8x1xf32, #tpu.memory_space<vmem>>, vector<8x1xf32>
    %5 = vector.broadcast %4 : vector<8x1xf32> to vector<8x2xf32>
    %6 = arith.addf %3, %5 : vector<8x2xf32>
    %c0_6 = arith.constant 0 : index
    %c0_7 = arith.constant 0 : index
    %c0_8 = arith.constant 0 : index
    %7 = vector.load %arg5[%c0_6, %c0_7, %c0_8] : memref<1x8x2xf32, #tpu.memory_space<vmem>>, vector<1x8x2xf32>
    %8 = vector.shape_cast %7 : vector<1x8x2xf32> to vector<8x2xf32>
    %9 = vector.shape_cast %6 : vector<8x2xf32> to vector<1x8x2xf32>
    tpu.vector_store %arg5[%c0_6, %c0_7, %c0_8], %9 {strides = array<i32>} : memref<1x8x2xf32, #tpu.memory_space<vmem>>, vector<1x8x2xf32>,
    return
  }
  func.func @transform_0(%arg0: i32, %arg1: i32) -> (i32, i32, i32) {
    %c0_i32 = arith.constant 0 : i32
    %c0_i32_0 = arith.constant 0 : i32
    return %arg0, %c0_i32, %arg1 : i32, i32, i32
  }
  func.func @transform_1(%arg0: i32, %arg1: i32) -> (i32, i32) {
    %c0_i32 = arith.constant 0 : i32
    %c0_i32_0 = arith.constant 0 : i32
    %c0_i32_1 = arith.constant 0 : i32
    return %c0_i32, %c0_i32_0 : i32, i32
  }
  func.func @transform_2(%arg0: i32, %arg1: i32) -> (i32, i32) {
    %c0_i32 = arith.constant 0 : i32
    %c0_i32_0 = arith.constant 0 : i32
    %c0_i32_1 = arith.constant 0 : i32
    return %c0_i32, %c0_i32_0 : i32, i32
  }
  func.func @transform_3(%arg0: i32, %arg1: i32) -> (i32, i32, i32) {
    %c0_i32 = arith.constant 0 : i32
    %c0_i32_0 = arith.constant 0 : i32
    return %arg0, %c0_i32, %arg1 : i32, i32, i32
  }
}

</mosaic_0001>

<llo_original>
// kernel: tpu_custom_call.1
$region0: #{tpu_custom_call.1}
  #allocation0 [shape = 'u32[]', space=smem, size = 0x4, offset = 0x4, fixed_abs, tag = 'smem constant byte address 0x4 - core index']
  #allocation1 [shape = 'u32[144,128]{1,0:T(1,128)}', space=vmem, size = 0x12000, scoped, tag = 'internal scratch']
  %s0 = inlined_call_operand.vmem [shape: f32[2,1024,2], index: 0, kind: input, shape index: {}]
  %s1 = inlined_call_operand.vmem [shape: f32[8,1024], index: 1, kind: input, shape index: {}]
  %s2 = inlined_call_operand.vmem [shape: f32[8,1], index: 2, kind: input, shape index: {}]
  %s3 = inlined_call_operand.vmem [shape: f32[2,8,2], index: 3, kind: output, shape index: {}]
  %s4 = sld [smem:[#allocation0]]
  $region45: #{tpu_custom_call.1} parent=0
    _
  %s6 = ssub.s32 1, %s4
  %s7 = scalar_select 0, %s6, %s4
  loop: start=0, step=1, limit=4
  $region2: #{tpu_custom_call.1} parent=0 // loop_pre_header
    _
  $region3: #{tpu_custom_call.1} parent=0 // loop_header
    %s9 = sphi 0, %s13
    %p10 = scmp.ge.s32.totalorder %s9, 4
    %s16 = sphi 0, %s28
    %s17 = sphi 0, %s24
    %s18 = sphi 0, %s16
    %s19 = sphi 0, %s17
    %s20 = sphi 0, %s18
    %s21 = sphi 0, %s19
    %s33 = sphi 0, %s35
    %s36 = sphi 0, %s33
    %s37 = sphi 0, %s36
    %s53 = sphi 0, %s37
    %s57 = sphi 0, %s57
    %s59 = sphi 0, %s57
    %s60 = sphi 0, %s59
    %s74 = sphi 0, %s60
    %s78 = sphi 0, %s78
    %s80 = sphi 0, %s78
    %s81 = sphi 0, %s80
    %s95 = sphi 0, %s81
    %s103 = sphi 0, %s105
    %s106 = sphi 0, %s103
    %s107 = sphi 0, %s106
    %s123 = sphi 0, %s107
  $region4: #{tpu_custom_call.1} parent=0 // loop_header_branch
    %12 = sbr.rel (%p10) target = $region8
  $region5: #{tpu_custom_call.1} parent=0 // loop_body
    %s14 = ssub.s32 %s9, 1
    %s15 = ssub.s32 %s9, 2
    %s22 = sadd.s32 1, %s17
    %p23 = scmp.ge.s32.totalorder %s22, 1
    %s24 = scalar_select %p23, 0, %s22
    %s25 = sadd.s32 1, %s16
    %s26 = scalar_select %p23, %s25, %s16
    %p27 = scmp.ge.s32.totalorder %s26, 2
    %s28 = scalar_select %p27, 0, %s26
    %s29 = ssub.s32 %s16, %s28
    %s30 = ssub.s32 %s17, %s24
    %s31 = sor.u32 %s29, %s30
    %p32 = scmp.eq.s32.totalorder %s31, 0
    %s34 = sadd.s32 %s33, 1
    %s35 = scalar_select %p32, %s33, %s34
    %p38 = pneg %p32
    %p39 = scmp.eq.s32.totalorder %s9, 1
    %p40 = por %p38, %p39
    %p41 = scmp.ne.s32.totalorder %s33, %s36
    %p42 = scmp.eq.s32.totalorder %s9, 0
    %p43 = por %p41, %p42
    %p44 = scmp.ne.s32.totalorder %s33, %s36
    %p45 = scmp.eq.s32.totalorder %s14, 1
    %p46 = por %p44, %p45
    %p47 = scmp.ne.s32.totalorder %s36, %s37
    %p48 = scmp.eq.s32.totalorder %s14, 0
    %p49 = por %p47, %p48
    %p50 = scmp.ne.s32.totalorder %s36, %s37
    %p51 = scmp.eq.s32.totalorder %s15, 1
    %p52 = por %p50, %p51
    %p54 = scmp.ne.s32.totalorder %s37, %s53
    %p55 = scmp.eq.s32.totalorder %s15, 0
    %p56 = por %p54, %p55
    %s58 = sadd.s32 %s57, 1
    %p61 = scmp.eq.s32.totalorder %s9, 1
    %p62 = scmp.ne.s32.totalorder %s57, %s59
    %p63 = scmp.eq.s32.totalorder %s9, 0
    %p64 = por %p62, %p63
    %p65 = scmp.ne.s32.totalorder %s57, %s59
    %p66 = scmp.eq.s32.totalorder %s14, 1
    %p67 = por %p65, %p66
    %p68 = scmp.ne.s32.totalorder %s59, %s60
    %p69 = scmp.eq.s32.totalorder %s14, 0
    %p70 = por %p68, %p69
    %p71 = scmp.ne.s32.totalorder %s59, %s60
    %p72 = scmp.eq.s32.totalorder %s15, 1
    %p73 = por %p71, %p72
    %p75 = scmp.ne.s32.totalorder %s60, %s74
    %p76 = scmp.eq.s32.totalorder %s15, 0
    %p77 = por %p75, %p76
    %s79 = sadd.s32 %s78, 1
    %p82 = scmp.eq.s32.totalorder %s9, 1
    %p83 = scmp.ne.s32.totalorder %s78, %s80
    %p84 = scmp.eq.s32.totalorder %s9, 0
    %p85 = por %p83, %p84
    %p86 = scmp.ne.s32.totalorder %s78, %s80
    %p87 = scmp.eq.s32.totalorder %s14, 1
    %p88 = por %p86, %p87
    %p89 = scmp.ne.s32.totalorder %s80, %s81
    %p90 = scmp.eq.s32.totalorder %s14, 0
    %p91 = por %p89, %p90
    %p92 = scmp.ne.s32.totalorder %s80, %s81
    %p93 = scmp.eq.s32.totalorder %s15, 1
    %p94 = por %p92, %p93
    %p96 = scmp.ne.s32.totalorder %s81, %s95
    %p97 = scmp.eq.s32.totalorder %s15, 0
    %p98 = por %p96, %p97
    %s99 = ssub.s32 %s16, %s28
    %s100 = ssub.s32 %s17, %s24
    %s101 = sor.u32 %s99, %s100
    %p102 = scmp.eq.s32.totalorder %s101, 0
    %s104 = sadd.s32 %s103, 1
    %s105 = scalar_select %p102, %s103, %s104
    %p108 = pneg %p102
    %p109 = scmp.eq.s32.totalorder %s9, 1
    %p110 = por %p108, %p109
    %p111 = scmp.ne.s32.totalorder %s103, %s106
    %p112 = scmp.eq.s32.totalorder %s9, 0
    %p113 = por %p111, %p112
    %p114 = scmp.ne.s32.totalorder %s103, %s106
    %p115 = scmp.eq.s32.totalorder %s14, 1
    %p116 = por %p114, %p115
    %p117 = scmp.ne.s32.totalorder %s106, %s107
    %p118 = scmp.eq.s32.totalorder %s14, 0
    %p119 = por %p117, %p118
    %p120 = scmp.ne.s32.totalorder %s106, %s107
    %p121 = scmp.eq.s32.totalorder %s15, 1
    %p122 = por %p120, %p121
    %p124 = scmp.ne.s32.totalorder %s107, %s123
    %p125 = scmp.eq.s32.totalorder %s15, 0
    %p126 = por %p124, %p125
    %p127 = scmp.le.s32.totalorder 1, %s9
    %p128 = scmp.lt.s32.totalorder %s9, 3
    %p129 = pnand %p127, %p128
    %p130 = pneg %p129
    // Predicated region
    $region9: #{tpu_custom_call.1} parent=5 // pred_check
      _
    $region10: #{tpu_custom_call.1} parent=5 // pred_check_branch
      %132 = sbr.rel (%p129) target = $region12
    $region11: #{tpu_custom_call.1} parent=5 // pred_region
      %s133 = ssub.s32 %s9, 1
      // Predicated region
      $region13: #{tpu_custom_call.1} parent=11 // pred_check
        %p134 = pneg %p70
      $region14: #{tpu_custom_call.1} parent=11 // pred_check_branch
        %136 = sbr.rel (%p134) target = $region16
      $region15: #{tpu_custom_call.1} parent=11 // pred_region
        _
      $region16: #{tpu_custom_call.1} parent=11 // pred_fallthru
        _
      // Predicated region
      $region17: #{tpu_custom_call.1} parent=11 // pred_check
        %p137 = pneg %p91
      $region18: #{tpu_custom_call.1} parent=11 // pred_check_branch
        %139 = sbr.rel (%p137) target = $region20
      $region19: #{tpu_custom_call.1} parent=11 // pred_region
        _
      $region20: #{tpu_custom_call.1} parent=11 // pred_fallthru
        _
    $region12: #{tpu_custom_call.1} parent=5 // pred_fallthru
      _
    %p140 = scmp.lt.s32.totalorder %s9, 2
    // Predicated region
    $region21: #{tpu_custom_call.1} parent=5 // pred_check
      %p141 = pneg %p140
    $region22: #{tpu_custom_call.1} parent=5 // pred_check_branch
      %143 = sbr.rel (%p141) target = $region24
    $region23: #{tpu_custom_call.1} parent=5 // pred_region
      // Predicated region
      $region25: #{tpu_custom_call.1} parent=23 // pred_check
        %p144 = pneg %p43
      $region26: #{tpu_custom_call.1} parent=23 // pred_check_branch
        %146 = sbr.rel (%p144) target = $region28
      $region27: #{tpu_custom_call.1} parent=23 // pred_region
        %p147 = scmp.lt.s32.totalorder %s16, 1
        %s148 = scalar_select %p147, %s16, 1
        %p149 = scmp.lt.s32.totalorder %s17, 0
        %s150 = scalar_select %p149, %s17, 0
        %s151 = smul.addr %s148, 128
        %s152 = sadd.s32 %s150, %s151
        %s153 = smul.addr %s152, 8
        %s154 = scalar_lea.vmem %s0, %s153
      $region28: #{tpu_custom_call.1} parent=23 // pred_fallthru
        _
    $region24: #{tpu_custom_call.1} parent=5 // pred_fallthru
      _
    %p155 = scmp.le.s32.totalorder 1, %s9
    %p156 = scmp.lt.s32.totalorder %s9, 3
    %p157 = pnand %p155, %p156
    %p158 = pneg %p157
    // Predicated region
    $region29: #{tpu_custom_call.1} parent=5 // pred_check
      _
    $region30: #{tpu_custom_call.1} parent=5 // pred_check_branch
      %160 = sbr.rel (%p157) target = $region32
    $region31: #{tpu_custom_call.1} parent=5 // pred_region
      %s161 = ssub.s32 %s9, 1
      %p162 = scmp.lt.s32.totalorder %s18, 1
      %s163 = scalar_select %p162, %s18, 1
      %p164 = scmp.lt.s32.totalorder %s19, 0
      %s165 = scalar_select %p164, %s19, 0
      %s166 = smul.addr %s163, 128
      %s167 = sadd.s32 %s165, %s166
      %s168 = smul.addr %s167, 8
      %s169 = scalar_lea.vmem %s0, %s168
      %p170 = pneg %p49
      %p171 = pneg %p46
      %p172 = pneg %p70
      %p173 = pneg %p67
      %p174 = pneg %p91
      %p175 = pneg %p88
      %p176 = pneg %p119
      %p177 = pneg %p116
      %p178 = scmp.lt.s32.totalorder %s18, 1
      %s179 = scalar_select %p178, %s18, 1
      %p180 = scmp.lt.s32.totalorder %s19, 0
      %s181 = scalar_select %p180, %s19, 0
      %s182 = sadd.s32 %s181, %s179
      %s183 = smul.addr %s182, 8
      %s184 = scalar_lea.vmem %s3, %s183
      %p185 = scmp.lt.s32.totalorder %s18, 1
      %s186 = scalar_select %p185, %s18, 1
      %p187 = scmp.lt.s32.totalorder %s19, 0
      %s188 = scalar_select %p187, %s19, 0
      %s189 = smul.addr %s186, 128
      %s190 = sadd.s32 %s188, %s189
      %s191 = smul.addr %s190, 8
      %s192 = scalar_lea.vmem %s0, %s191
      %p193 = scmp.lt.s32.totalorder %s18, 1
      %s194 = scalar_select %p193, %s18, 1
      %p195 = scmp.lt.s32.totalorder %s19, 0
      %s196 = scalar_select %p195, %s19, 0
      %s197 = sadd.s32 %s196, %s194
      %s198 = smul.addr %s197, 8
      %s199 = scalar_lea.vmem %s3, %s198
      %v200 = vld [vmem:[%s1] sm:$0xff]
      %v201 = vld [vmem:[%s1 + $0x8] sm:$0xff]
      %v202 = vld [vmem:[%s1 + $0x10] sm:$0xff]
      %v203 = vld [vmem:[%s1 + $0x18] sm:$0xff]
      %v204 = vld [vmem:[%s1 + $0x20] sm:$0xff]
      %v205 = vld [vmem:[%s1 + $0x28] sm:$0xff]
      %v206 = vld [vmem:[%s1 + $0x30] sm:$0xff]
      %v207 = vld [vmem:[%s1 + $0x38] sm:$0xff]
      %v208 = vld [vmem:[%s192] sm:$0xff]
      %v209 = vld [vmem:[%s192 + $0x8] sm:$0xff]
      %v210 = vld [vmem:[%s192 + $0x10] sm:$0xff]
      %v211 = vld [vmem:[%s192 + $0x18] sm:$0xff]
      %v212 = vld [vmem:[%s192 + $0x20] sm:$0xff]
      %v213 = vld [vmem:[%s192 + $0x28] sm:$0xff]
      %v214 = vld [vmem:[%s192 + $0x30] sm:$0xff]
      %v215 = vld [vmem:[%s192 + $0x38] sm:$0xff]
      %v216 = vld [vmem:[%s192 + $0x40] sm:$0xff]
      %v217 = vld [vmem:[%s192 + $0x48] sm:$0xff]
      %v218 = vld [vmem:[%s192 + $0x50] sm:$0xff]
      %v219 = vld [vmem:[%s192 + $0x58] sm:$0xff]
      %v220 = vld [vmem:[%s192 + $0x60] sm:$0xff]
      %v221 = vld [vmem:[%s192 + $0x68] sm:$0xff]
      %v222 = vld [vmem:[%s192 + $0x70] sm:$0xff]
      %v223 = vld [vmem:[%s192 + $0x78] sm:$0xff]
      %v224 = vld [vmem:[%s192 + $0x80] sm:$0xff]
      %v225 = vld [vmem:[%s192 + $0x88] sm:$0xff]
      %v226 = vld [vmem:[%s192 + $0x90] sm:$0xff]
      %v227 = vld [vmem:[%s192 + $0x98] sm:$0xff]
      %v228 = vld [vmem:[%s192 + $0xa0] sm:$0xff]
      %v229 = vld [vmem:[%s192 + $0xa8] sm:$0xff]
      %v230 = vld [vmem:[%s192 + $0xb0] sm:$0xff]
      %v231 = vld [vmem:[%s192 + $0xb8] sm:$0xff]
      %v232 = vld [vmem:[%s192 + $0xc0] sm:$0xff]
      %v233 = vld [vmem:[%s192 + $0xc8] sm:$0xff]
      %v234 = vld [vmem:[%s192 + $0xd0] sm:$0xff]
      %v235 = vld [vmem:[%s192 + $0xd8] sm:$0xff]
      %v236 = vld [vmem:[%s192 + $0xe0] sm:$0xff]
      %v237 = vld [vmem:[%s192 + $0xe8] sm:$0xff]
      %v238 = vld [vmem:[%s192 + $0xf0] sm:$0xff]
      %v239 = vld [vmem:[%s192 + $0xf8] sm:$0xff]
      %v240 = vld [vmem:[%s192 + $0x100] sm:$0xff]
      %v241 = vld [vmem:[%s192 + $0x108] sm:$0xff]
      %v242 = vld [vmem:[%s192 + $0x110] sm:$0xff]
      %v243 = vld [vmem:[%s192 + $0x118] sm:$0xff]
      %v244 = vld [vmem:[%s192 + $0x120] sm:$0xff]
      %v245 = vld [vmem:[%s192 + $0x128] sm:$0xff]
      %v246 = vld [vmem:[%s192 + $0x130] sm:$0xff]
      %v247 = vld [vmem:[%s192 + $0x138] sm:$0xff]
      %v248 = vld [vmem:[%s192 + $0x140] sm:$0xff]
      %v249 = vld [vmem:[%s192 + $0x148] sm:$0xff]
      %v250 = vld [vmem:[%s192 + $0x150] sm:$0xff]
      %v251 = vld [vmem:[%s192 + $0x158] sm:$0xff]
      %v252 = vld [vmem:[%s192 + $0x160] sm:$0xff]
      %v253 = vld [vmem:[%s192 + $0x168] sm:$0xff]
      %v254 = vld [vmem:[%s192 + $0x170] sm:$0xff]
      %v255 = vld [vmem:[%s192 + $0x178] sm:$0xff]
      %v256 = vld [vmem:[%s192 + $0x180] sm:$0xff]
      %v257 = vld [vmem:[%s192 + $0x188] sm:$0xff]
      %v258 = vld [vmem:[%s192 + $0x190] sm:$0xff]
      %v259 = vld [vmem:[%s192 + $0x198] sm:$0xff]
      %v260 = vld [vmem:[%s192 + $0x1a0] sm:$0xff]
      %v261 = vld [vmem:[%s192 + $0x1a8] sm:$0xff]
      %v262 = vld [vmem:[%s192 + $0x1b0] sm:$0xff]
      %v263 = vld [vmem:[%s192 + $0x1b8] sm:$0xff]
      %v264 = vld [vmem:[%s192 + $0x1c0] sm:$0xff]
      %v265 = vld [vmem:[%s192 + $0x1c8] sm:$0xff]
      %v266 = vld [vmem:[%s192 + $0x1d0] sm:$0xff]
      %v267 = vld [vmem:[%s192 + $0x1d8] sm:$0xff]
      %v268 = vld [vmem:[%s192 + $0x1e0] sm:$0xff]
      %v269 = vld [vmem:[%s192 + $0x1e8] sm:$0xff]
      %v270 = vld [vmem:[%s192 + $0x1f0] sm:$0xff]
      %v271 = vld [vmem:[%s192 + $0x1f8] sm:$0xff]
      %v272 = vld [vmem:[%s192 + $0x200] sm:$0xff]
      %v273 = vld [vmem:[%s192 + $0x208] sm:$0xff]
      %v274 = vld [vmem:[%s192 + $0x210] sm:$0xff]
      %v275 = vld [vmem:[%s192 + $0x218] sm:$0xff]
      %v276 = vld [vmem:[%s192 + $0x220] sm:$0xff]
      %v277 = vld [vmem:[%s192 + $0x228] sm:$0xff]
      %v278 = vld [vmem:[%s192 + $0x230] sm:$0xff]
      %v279 = vld [vmem:[%s192 + $0x238] sm:$0xff]
      %v280 = vld [vmem:[%s192 + $0x240] sm:$0xff]
      %v281 = vld [vmem:[%s192 + $0x248] sm:$0xff]
      %v282 = vld [vmem:[%s192 + $0x250] sm:$0xff]
      %v283 = vld [vmem:[%s192 + $0x258] sm:$0xff]
      %v284 = vld [vmem:[%s192 + $0x260] sm:$0xff]
      %v285 = vld [vmem:[%s192 + $0x268] sm:$0xff]
      %v286 = vld [vmem:[%s192 + $0x270] sm:$0xff]
      %v287 = vld [vmem:[%s192 + $0x278] sm:$0xff]
      %v288 = vld [vmem:[%s192 + $0x280] sm:$0xff]
      %v289 = vld [vmem:[%s192 + $0x288] sm:$0xff]
      %v290 = vld [vmem:[%s192 + $0x290] sm:$0xff]
      %v291 = vld [vmem:[%s192 + $0x298] sm:$0xff]
      %v292 = vld [vmem:[%s192 + $0x2a0] sm:$0xff]
      %v293 = vld [vmem:[%s192 + $0x2a8] sm:$0xff]
      %v294 = vld [vmem:[%s192 + $0x2b0] sm:$0xff]
      %v295 = vld [vmem:[%s192 + $0x2b8] sm:$0xff]
      %v296 = vld [vmem:[%s192 + $0x2c0] sm:$0xff]
      %v297 = vld [vmem:[%s192 + $0x2c8] sm:$0xff]
      %v298 = vld [vmem:[%s192 + $0x2d0] sm:$0xff]
      %v299 = vld [vmem:[%s192 + $0x2d8] sm:$0xff]
      %v300 = vld [vmem:[%s192 + $0x2e0] sm:$0xff]
      %v301 = vld [vmem:[%s192 + $0x2e8] sm:$0xff]
      %v302 = vld [vmem:[%s192 + $0x2f0] sm:$0xff]
      %v303 = vld [vmem:[%s192 + $0x2f8] sm:$0xff]
      %v304 = vld [vmem:[%s192 + $0x300] sm:$0xff]
      %v305 = vld [vmem:[%s192 + $0x308] sm:$0xff]
      %v306 = vld [vmem:[%s192 + $0x310] sm:$0xff]
      %v307 = vld [vmem:[%s192 + $0x318] sm:$0xff]
      %v308 = vld [vmem:[%s192 + $0x320] sm:$0xff]
      %v309 = vld [vmem:[%s192 + $0x328] sm:$0xff]
      %v310 = vld [vmem:[%s192 + $0x330] sm:$0xff]
      %v311 = vld [vmem:[%s192 + $0x338] sm:$0xff]
      %v312 = vld [vmem:[%s192 + $0x340] sm:$0xff]
      %v313 = vld [vmem:[%s192 + $0x348] sm:$0xff]
      %v314 = vld [vmem:[%s192 + $0x350] sm:$0xff]
      %v315 = vld [vmem:[%s192 + $0x358] sm:$0xff]
      %v316 = vld [vmem:[%s192 + $0x360] sm:$0xff]
      %v317 = vld [vmem:[%s192 + $0x368] sm:$0xff]
      %v318 = vld [vmem:[%s192 + $0x370] sm:$0xff]
      %v319 = vld [vmem:[%s192 + $0x378] sm:$0xff]
      %v320 = vld [vmem:[%s192 + $0x380] sm:$0xff]
      %v321 = vld [vmem:[%s192 + $0x388] sm:$0xff]
      %v322 = vld [vmem:[%s192 + $0x390] sm:$0xff]
      %v323 = vld [vmem:[%s192 + $0x398] sm:$0xff]
      %v324 = vld [vmem:[%s192 + $0x3a0] sm:$0xff]
      %v325 = vld [vmem:[%s192 + $0x3a8] sm:$0xff]
      %v326 = vld [vmem:[%s192 + $0x3b0] sm:$0xff]
      %v327 = vld [vmem:[%s192 + $0x3b8] sm:$0xff]
      %v328 = vld [vmem:[%s192 + $0x3c0] sm:$0xff]
      %v329 = vld [vmem:[%s192 + $0x3c8] sm:$0xff]
      %v330 = vld [vmem:[%s192 + $0x3d0] sm:$0xff]
      %v331 = vld [vmem:[%s192 + $0x3d8] sm:$0xff]
      %v332 = vld [vmem:[%s192 + $0x3e0] sm:$0xff]
      %v333 = vld [vmem:[%s192 + $0x3e8] sm:$0xff]
      %v334 = vld [vmem:[%s192 + $0x3f0] sm:$0xff]
      %v335 = vld [vmem:[%s192 + $0x3f8] sm:$0xff]
      %v336 = vld [vmem:[%s2] sm:$0xff]
      %338 = vset.pattern.permute.xlu0 0
      %339 = vperm.xlu0 %338, %v336
      %v340 = vpop.permute.xlu0 %339
      %342 = vmatprep.subr.mxu0 0.0
      %343 = vmatpush1.msra.mxu0 %v208
      %344 = vmatprep.subr.mxu0 0.0
      %345 = vmatpush1.msra.mxu0 %v209
      %346 = vmatprep.subr.mxu0 0.0
      %347 = vmatpush1.msra.mxu0 %v210
      %348 = vmatprep.subr.mxu0 0.0
      %349 = vmatpush1.msra.mxu0 %v211
      %350 = vmatprep.subr.mxu0 0.0
      %351 = vmatpush1.msra.mxu0 %v212
      %352 = vmatprep.subr.mxu0 0.0
      %353 = vmatpush1.msra.mxu0 %v213
      %354 = vmatprep.subr.mxu0 0.0
      %355 = vmatpush1.msra.mxu0 %v214
      %356 = vmatprep.subr.mxu0 0.0
      %357 = vmatpush1.msra.mxu0 %v215
      %358 = vmatprep.subr.mxu0 0.0
      %359 = vmatpush1.msra.mxu0 %v216
      %360 = vmatprep.subr.mxu0 0.0
      %361 = vmatpush1.msra.mxu0 %v217
      %362 = vmatprep.subr.mxu0 0.0
      %363 = vmatpush1.msra.mxu0 %v218
      %364 = vmatprep.subr.mxu0 0.0
      %365 = vmatpush1.msra.mxu0 %v219
      %366 = vmatprep.subr.mxu0 0.0
      %367 = vmatpush1.msra.mxu0 %v220
      %368 = vmatprep.subr.mxu0 0.0
      %369 = vmatpush1.msra.mxu0 %v221
      %370 = vmatprep.subr.mxu0 0.0
      %371 = vmatpush1.msra.mxu0 %v222
      %372 = vmatprep.subr.mxu0 0.0
      %373 = vmatpush1.msra.mxu0 %v223
      %374 = vmatprep.subr.mxu0 0.0
      %375 = vmatpush1.msra.mxu0 %v224
      %376 = vmatprep.subr.mxu0 0.0
      %377 = vmatpush1.msra.mxu0 %v225
      %378 = vmatprep.subr.mxu0 0.0
      %379 = vmatpush1.msra.mxu0 %v226
      %380 = vmatprep.subr.mxu0 0.0
      %381 = vmatpush1.msra.mxu0 %v227
      %382 = vmatprep.subr.mxu0 0.0
      %383 = vmatpush1.msra.mxu0 %v228
      %384 = vmatprep.subr.mxu0 0.0
      %385 = vmatpush1.msra.mxu0 %v229
      %386 = vmatprep.subr.mxu0 0.0
      %387 = vmatpush1.msra.mxu0 %v230
      %388 = vmatprep.subr.mxu0 0.0
      %389 = vmatpush1.msra.mxu0 %v231
      %390 = vmatprep.subr.mxu0 0.0
      %391 = vmatpush1.msra.mxu0 %v232
      %392 = vmatprep.subr.mxu0 0.0
      %393 = vmatpush1.msra.mxu0 %v233
      %394 = vmatprep.subr.mxu0 0.0
      %395 = vmatpush1.msra.mxu0 %v234
      %396 = vmatprep.subr.mxu0 0.0
      %397 = vmatpush1.msra.mxu0 %v235
      %398 = vmatprep.subr.mxu0 0.0
      %399 = vmatpush1.msra.mxu0 %v236
      %400 = vmatprep.subr.mxu0 0.0
      %401 = vmatpush1.msra.mxu0 %v237
      %402 = vmatprep.subr.mxu0 0.0
      %403 = vmatpush1.msra.mxu0 %v238
      %404 = vmatprep.subr.mxu0 0.0
      %405 = vmatpush1.msra.mxu0 %v239
      %406 = vmatprep.mubr.f32.mxu0 %v201
      %407 = vmatmul.mubr.f32.gmra.mrb[0].mxu0 %v200
      %v408 = vpop.f32.mrb[0].mxu0
      %v409 = vadd.f32 %v340, %v408
      %v410 = vpop.f32.mrb[0].mxu0
      %411 = vdwg.mxu0
      %412 = vmatprep.subr.mxu0 0.0
      %413 = vmatpush1.msra.mxu0 %v240
      %414 = vmatprep.subr.mxu0 0.0
      %415 = vmatpush1.msra.mxu0 %v241
      %416 = vmatprep.subr.mxu0 0.0
      %417 = vmatpush1.msra.mxu0 %v242
      %418 = vmatprep.subr.mxu0 0.0
      %419 = vmatpush1.msra.mxu0 %v243
      %420 = vmatprep.subr.mxu0 0.0
      %421 = vmatpush1.msra.mxu0 %v244
      %422 = vmatprep.subr.mxu0 0.0
      %423 = vmatpush1.msra.mxu0 %v245
      %424 = vmatprep.subr.mxu0 0.0
      %425 = vmatpush1.msra.mxu0 %v246
      %426 = vmatprep.subr.mxu0 0.0
      %427 = vmatpush1.msra.mxu0 %v247
      %428 = vmatprep.subr.mxu0 0.0
      %429 = vmatpush1.msra.mxu0 %v248
      %430 = vmatprep.subr.mxu0 0.0
      %431 = vmatpush1.msra.mxu0 %v249
      %432 = vmatprep.subr.mxu0 0.0
      %433 = vmatpush1.msra.mxu0 %v250
      %434 = vmatprep.subr.mxu0 0.0
      %435 = vmatpush1.msra.mxu0 %v251
      %436 = vmatprep.subr.mxu0 0.0
      %437 = vmatpush1.msra.mxu0 %v252
      %438 = vmatprep.subr.mxu0 0.0
      %439 = vmatpush1.msra.mxu0 %v253
      %440 = vmatprep.subr.mxu0 0.0
      %441 = vmatpush1.msra.mxu0 %v254
      %442 = vmatprep.subr.mxu0 0.0
      %443 = vmatpush1.msra.mxu0 %v255
      %444 = vmatprep.subr.mxu0 0.0
      %445 = vmatpush1.msra.mxu0 %v256
      %446 = vmatprep.subr.mxu0 0.0
      %447 = vmatpush1.msra.mxu0 %v257
      %448 = vmatprep.subr.mxu0 0.0
      %449 = vmatpush1.msra.mxu0 %v258
      %450 = vmatprep.subr.mxu0 0.0
      %451 = vmatpush1.msra.mxu0 %v259
      %452 = vmatprep.subr.mxu0 0.0
      %453 = vmatpush1.msra.mxu0 %v260
      %454 = vmatprep.subr.mxu0 0.0
      %455 = vmatpush1.msra.mxu0 %v261
      %456 = vmatprep.subr.mxu0 0.0
      %457 = vmatpush1.msra.mxu0 %v262
      %458 = vmatprep.subr.mxu0 0.0
      %459 = vmatpush1.msra.mxu0 %v263
      %460 = vmatprep.subr.mxu0 0.0
      %461 = vmatpush1.msra.mxu0 %v264
      %462 = vmatprep.subr.mxu0 0.0
      %463 = vmatpush1.msra.mxu0 %v265
      %464 = vmatprep.subr.mxu0 0.0
      %465 = vmatpush1.msra.mxu0 %v266
      %466 = vmatprep.subr.mxu0 0.0
      %467 = vmatpush1.msra.mxu0 %v267
      %468 = vmatprep.subr.mxu0 0.0
      %469 = vmatpush1.msra.mxu0 %v268
      %470 = vmatprep.subr.mxu0 0.0
      %471 = vmatpush1.msra.mxu0 %v269
      %472 = vmatprep.subr.mxu0 0.0
      %473 = vmatpush1.msra.mxu0 %v270
      %474 = vmatprep.subr.mxu0 0.0
      %475 = vmatpush1.msra.mxu0 %v271
      %476 = vmatprep.mubr.f32.mxu0 %v203
      %477 = vmatmul.mubr.f32.gmra.mrb[0].mxu0 %v202
      %v478 = vpop.f32.mrb[0].mxu0
      %v479 = vadd.f32 %v409, %v478
      %v480 = vpop.f32.mrb[0].mxu0
      %481 = vdwg.mxu0
      %482 = vmatprep.subr.mxu0 0.0
      %483 = vmatpush1.msra.mxu0 %v272
      %484 = vmatprep.subr.mxu0 0.0
      %485 = vmatpush1.msra.mxu0 %v273
      %486 = vmatprep.subr.mxu0 0.0
      %487 = vmatpush1.msra.mxu0 %v274
      %488 = vmatprep.subr.mxu0 0.0
      %489 = vmatpush1.msra.mxu0 %v275
      %490 = vmatprep.subr.mxu0 0.0
      %491 = vmatpush1.msra.mxu0 %v276
      %492 = vmatprep.subr.mxu0 0.0
      %493 = vmatpush1.msra.mxu0 %v277
      %494 = vmatprep.subr.mxu0 0.0
      %495 = vmatpush1.msra.mxu0 %v278
      %496 = vmatprep.subr.mxu0 0.0
      %497 = vmatpush1.msra.mxu0 %v279
      %498 = vmatprep.subr.mxu0 0.0
      %499 = vmatpush1.msra.mxu0 %v280
      %500 = vmatprep.subr.mxu0 0.0
      %501 = vmatpush1.msra.mxu0 %v281
      %502 = vmatprep.subr.mxu0 0.0
      %503 = vmatpush1.msra.mxu0 %v282
      %504 = vmatprep.subr.mxu0 0.0
      %505 = vmatpush1.msra.mxu0 %v283
      %506 = vmatprep.subr.mxu0 0.0
      %507 = vmatpush1.msra.mxu0 %v284
      %508 = vmatprep.subr.mxu0 0.0
      %509 = vmatpush1.msra.mxu0 %v285
      %510 = vmatprep.subr.mxu0 0.0
      %511 = vmatpush1.msra.mxu0 %v286
      %512 = vmatprep.subr.mxu0 0.0
      %513 = vmatpush1.msra.mxu0 %v287
      %514 = vmatprep.subr.mxu0 0.0
      %515 = vmatpush1.msra.mxu0 %v288
      %516 = vmatprep.subr.mxu0 0.0
      %517 = vmatpush1.msra.mxu0 %v289
      %518 = vmatprep.subr.mxu0 0.0
      %519 = vmatpush1.msra.mxu0 %v290
      %520 = vmatprep.subr.mxu0 0.0
      %521 = vmatpush1.msra.mxu0 %v291
      %522 = vmatprep.subr.mxu0 0.0
      %523 = vmatpush1.msra.mxu0 %v292
      %524 = vmatprep.subr.mxu0 0.0
      %525 = vmatpush1.msra.mxu0 %v293
      %526 = vmatprep.subr.mxu0 0.0
      %527 = vmatpush1.msra.mxu0 %v294
      %528 = vmatprep.subr.mxu0 0.0
      %529 = vmatpush1.msra.mxu0 %v295
      %530 = vmatprep.subr.mxu0 0.0
      %531 = vmatpush1.msra.mxu0 %v296
      %532 = vmatprep.subr.mxu0 0.0
      %533 = vmatpush1.msra.mxu0 %v297
      %534 = vmatprep.subr.mxu0 0.0
      %535 = vmatpush1.msra.mxu0 %v298
      %536 = vmatprep.subr.mxu0 0.0
      %537 = vmatpush1.msra.mxu0 %v299
      %538 = vmatprep.subr.mxu0 0.0
      %539 = vmatpush1.msra.mxu0 %v300
      %540 = vmatprep.subr.mxu0 0.0
      %541 = vmatpush1.msra.mxu0 %v301
      %542 = vmatprep.subr.mxu0 0.0
      %543 = vmatpush1.msra.mxu0 %v302
      %544 = vmatprep.subr.mxu0 0.0
      %545 = vmatpush1.msra.mxu0 %v303
      %546 = vmatprep.mubr.f32.mxu0 %v205
      %547 = vmatmul.mubr.f32.gmra.mrb[0].mxu0 %v204
      %v548 = vpop.f32.mrb[0].mxu0
      %v549 = vadd.f32 %v479, %v548
      %v550 = vpop.f32.mrb[0].mxu0
      %551 = vdwg.mxu0
      %552 = vmatprep.subr.mxu0 0.0
      %553 = vmatpush1.msra.mxu0 %v304
      %554 = vmatprep.subr.mxu0 0.0
      %555 = vmatpush1.msra.mxu0 %v305
      %556 = vmatprep.subr.mxu0 0.0
      %557 = vmatpush1.msra.mxu0 %v306
      %558 = vmatprep.subr.mxu0 0.0
      %559 = vmatpush1.msra.mxu0 %v307
      %560 = vmatprep.subr.mxu0 0.0
      %561 = vmatpush1.msra.mxu0 %v308
      %562 = vmatprep.subr.mxu0 0.0
      %563 = vmatpush1.msra.mxu0 %v309
      %564 = vmatprep.subr.mxu0 0.0
      %565 = vmatpush1.msra.mxu0 %v310
      %566 = vmatprep.subr.mxu0 0.0
      %567 = vmatpush1.msra.mxu0 %v311
      %568 = vmatprep.subr.mxu0 0.0
      %569 = vmatpush1.msra.mxu0 %v312
      %570 = vmatprep.subr.mxu0 0.0
      %571 = vmatpush1.msra.mxu0 %v313
      %572 = vmatprep.subr.mxu0 0.0
      %573 = vmatpush1.msra.mxu0 %v314
      %574 = vmatprep.subr.mxu0 0.0
      %575 = vmatpush1.msra.mxu0 %v315
      %576 = vmatprep.subr.mxu0 0.0
      %577 = vmatpush1.msra.mxu0 %v316
      %578 = vmatprep.subr.mxu0 0.0
      %579 = vmatpush1.msra.mxu0 %v317
      %580 = vmatprep.subr.mxu0 0.0
      %581 = vmatpush1.msra.mxu0 %v318
      %582 = vmatprep.subr.mxu0 0.0
      %583 = vmatpush1.msra.mxu0 %v319
      %584 = vmatprep.subr.mxu0 0.0
      %585 = vmatpush1.msra.mxu0 %v320
      %586 = vmatprep.subr.mxu0 0.0
      %587 = vmatpush1.msra.mxu0 %v321
      %588 = vmatprep.subr.mxu0 0.0
      %589 = vmatpush1.msra.mxu0 %v322
      %590 = vmatprep.subr.mxu0 0.0
      %591 = vmatpush1.msra.mxu0 %v323
      %592 = vmatprep.subr.mxu0 0.0
      %593 = vmatpush1.msra.mxu0 %v324
      %594 = vmatprep.subr.mxu0 0.0
      %595 = vmatpush1.msra.mxu0 %v325
      %596 = vmatprep.subr.mxu0 0.0
      %597 = vmatpush1.msra.mxu0 %v326
      %598 = vmatprep.subr.mxu0 0.0
      %599 = vmatpush1.msra.mxu0 %v327
      %600 = vmatprep.subr.mxu0 0.0
      %601 = vmatpush1.msra.mxu0 %v328
      %602 = vmatprep.subr.mxu0 0.0
      %603 = vmatpush1.msra.mxu0 %v329
      %604 = vmatprep.subr.mxu0 0.0
      %605 = vmatpush1.msra.mxu0 %v330
      %606 = vmatprep.subr.mxu0 0.0
      %607 = vmatpush1.msra.mxu0 %v331
      %608 = vmatprep.subr.mxu0 0.0
      %609 = vmatpush1.msra.mxu0 %v332
      %610 = vmatprep.subr.mxu0 0.0
      %611 = vmatpush1.msra.mxu0 %v333
      %612 = vmatprep.subr.mxu0 0.0
      %613 = vmatpush1.msra.mxu0 %v334
      %614 = vmatprep.subr.mxu0 0.0
      %615 = vmatpush1.msra.mxu0 %v335
      %616 = vmatprep.mubr.f32.mxu0 %v207
      %617 = vmatmul.mubr.f32.gmra.mrb[0].mxu0 %v206
      %v618 = vpop.f32.mrb[0].mxu0
      %v619 = vadd.f32 %v549, %v618
      %v620 = vpop.f32.mrb[0].mxu0
      %621 = vdwg.mxu0
      %vm622 = vcmask 15360
      %623 = vst.msk [vmem:[%s199] sm:$0xff] %vm622, %v619
      %p624 = scmp.lt.s32.totalorder %s18, 1
      %s625 = scalar_select %p624, %s18, 1
      %p626 = scmp.lt.s32.totalorder %s19, 0
      %s627 = scalar_select %p626, %s19, 0
      %s628 = sadd.s32 %s627, %s625
      %s629 = smul.addr %s628, 8
      %s630 = scalar_lea.vmem %s3, %s629
      // Predicated region
      $region33: #{tpu_custom_call.1} parent=31 // pred_check
        %p631 = pneg %p116
      $region34: #{tpu_custom_call.1} parent=31 // pred_check_branch
        %633 = sbr.rel (%p631) target = $region36
      $region35: #{tpu_custom_call.1} parent=31 // pred_region
        _
      $region36: #{tpu_custom_call.1} parent=31 // pred_fallthru
        _
    $region32: #{tpu_custom_call.1} parent=5 // pred_fallthru
      _
    %p634 = scmp.le.s32.totalorder 2, %s9
    // Predicated region
    $region37: #{tpu_custom_call.1} parent=5 // pred_check
      %p635 = pneg %p634
    $region38: #{tpu_custom_call.1} parent=5 // pred_check_branch
      %637 = sbr.rel (%p635) target = $region40
    $region39: #{tpu_custom_call.1} parent=5 // pred_region
      %s638 = ssub.s32 %s9, 2
      // Predicated region
      $region41: #{tpu_custom_call.1} parent=39 // pred_check
        %p639 = pneg %p122
      $region42: #{tpu_custom_call.1} parent=39 // pred_check_branch
        %641 = sbr.rel (%p639) target = $region44
      $region43: #{tpu_custom_call.1} parent=39 // pred_region
        %p642 = scmp.lt.s32.totalorder %s20, 1
        %s643 = scalar_select %p642, %s20, 1
        %p644 = scmp.lt.s32.totalorder %s21, 0
        %s645 = scalar_select %p644, %s21, 0
        %s646 = sadd.s32 %s645, %s643
        %s647 = smul.addr %s646, 8
        %s648 = scalar_lea.vmem %s3, %s647
      $region44: #{tpu_custom_call.1} parent=39 // pred_fallthru
        _
    $region40: #{tpu_custom_call.1} parent=5 // pred_fallthru
      _
  $region6: #{tpu_custom_call.1} parent=0 // loop_footer
    %s13 = sadd.s32 1, %s9
  $region7: #{tpu_custom_call.1} parent=0 // loop_footer_branch
    %8 = sbr.rel target = $region3
  $region8: #{tpu_custom_call.1} parent=0 // loop_exit
    _

</llo_original>
